<compile_context>
chip_gen: v5e
topology: v5e:2x2
jax: 0.10.0
libtpu: 0.0.40
codegen_flags: <defaults>
</compile_context>

<pallas_src>
import functools

import jax
import jax.numpy as jnp
from jax.experimental import pallas as pl
from jax.experimental.pallas import tpu as pltpu


def diffreact_kernel(*refs, tr, nyl, num_tiles):
    """refs = (scal, x[, up_halo, dn_halo], out)

    scal (SMEM f32[11]) = [a/dx^2, b/dx^2, k,
                           u_left, u_right, u_top, u_bottom,
                           v_left, v_right, v_top, v_bottom]
    x    (VMEM f32[2, tr, nyl])  row tile of [U ; V]
    up_halo/dn_halo (VMEM f32[2, 8, nyl])  8-row blocks adjacent to this tile
    out  (VMEM f32[2, tr, nyl])  [dUdt ; dVdt] for this row tile."""
    if num_tiles > 1:
        scal_ref, x_ref, up_ref, dn_ref, o_ref = refs
    else:
        scal_ref, x_ref, o_ref = refs
        up_ref = dn_ref = None

    t = pl.program_id(0)

    a_coef = scal_ref[0]   # a / dx^2
    b_coef = scal_ref[1]   # b / dx^2
    k = scal_ref[2]

    # Boundary masks, built once and shared by both channels.
    row = jax.lax.broadcasted_iota(jnp.int32, (tr, nyl), 0)
    col = jax.lax.broadcasted_iota(jnp.int32, (tr, nyl), 1)
    at_top = row == 0
    at_bottom = row == tr - 1
    at_left = col == 0
    at_right = col == nyl - 1

    def lap_sum(c, bc_left, bc_right, bc_top, bc_bottom):
        # 5-point neighbour sum (unscaled by 1/dx^2).  pltpu.roll keeps operands
        # lane/sublane aligned; boundary rows/cols are patched with either the
        # Dirichlet value (grid edge) or the neighbouring tile's halo row.
        x = x_ref[c]                                               # (tr, nyl)
        if up_ref is None:
            top_fill = bc_top
            bot_fill = bc_bottom
        else:
            top_fill = jnp.where(t == 0, bc_top, up_ref[c, 7:8, :])              # (1, nyl)
            bot_fill = jnp.where(t == num_tiles - 1, bc_bottom, dn_ref[c, 0:1, :])
        up = jnp.where(at_top, top_fill, pltpu.roll(x, 1, axis=0))
        down = jnp.where(at_bottom, bot_fill, pltpu.roll(x, tr - 1, axis=0))
        left = jnp.where(at_left, bc_left, pltpu.roll(x, 1, axis=1))
        right = jnp.where(at_right, bc_right, pltpu.roll(x, nyl - 1, axis=1))
        return x, up + down + left + right - 4.0 * x

    u, lap_u = lap_sum(0, scal_ref[3], scal_ref[4], scal_ref[5], scal_ref[6])
    v, lap_v = lap_sum(1, scal_ref[7], scal_ref[8], scal_ref[9], scal_ref[10])

    # Full-tile, lane-dense stores.
    o_ref[0] = a_coef * lap_u + u - u * u * u - v - k
    o_ref[1] = b_coef * lap_v + u - v


def _round_up(x, m):
    return ((x + m - 1) // m) * m


def diffreact_forward(state, bc, params_org, dx, *, row_tile=None):
    """state: f32[1, 2, Nx, Ny]
       bc:    f32[1, 2, 4] per-channel Dirichlet (left, right, top, bottom)
       params_org: dict of raw scalars {a_org, b_org, k_org};  dx: python float."""
    B, C2, Nx, Ny = state.shape
    assert B == 1 and C2 == 2, "torch.cat with bc[:1, ...] forces batch == 1"

    nxr = _round_up(Nx, 8)      # sublane granularity (rows)
    nyl = _round_up(Ny, 128)    # lane granularity (cols)

    # ---- glue: parameter transforms + coefficient folding (plain JAX) ----
    a = jax.nn.sigmoid(params_org["a_org"]) * 0.01
    b = jax.nn.sigmoid(params_org["b_org"]) * 0.01
    k = jax.nn.sigmoid(params_org["k_org"]) * 0.01
    inv_dx2 = jnp.float32(1.0 / (dx * dx))
    bcf = bc.astype(jnp.float32)
    scal = jnp.concatenate(
        [jnp.stack([a * inv_dx2, b * inv_dx2, k]).astype(jnp.float32),
         bcf[0, 0],     # U boundaries: left, right, top, bottom
         bcf[0, 1]])    # V boundaries: left, right, top, bottom

    uv = state[0].astype(jnp.float32)                              # (2, Nx, Ny)

    # Pad ONLY when misaligned.  The first pad column/row is filled with the
    # right/bottom Dirichlet value so the last valid column/row sees the correct
    # neighbour; pad outputs are garbage and sliced off below.
    if nyl != Ny:
        right_fill = jnp.broadcast_to(bcf[0, :, 1][:, None, None], (2, Nx, nyl - Ny))
        uv = jnp.concatenate([uv, right_fill], axis=2)
    if nxr != Nx:
        bottom_fill = jnp.broadcast_to(bcf[0, :, 3][:, None, None],
                                       (2, nxr - Nx, uv.shape[2]))
        uv = jnp.concatenate([uv, bottom_fill], axis=1)

    # ---- row-tile selection: a few MiB per block keeps v7x (64 MiB VMEM) happy ----
    if row_tile is None:
        row_bytes = 2 * nyl * 4
        tr_target = max(8, min(512, ((2 * 1024 * 1024) // row_bytes) // 8 * 8))
        TR = 8
        for cand in range(tr_target, 7, -8):
            if nxr % cand == 0:
                TR = cand
                break
    else:
        assert row_tile % 8 == 0 and nxr % row_tile == 0
        TR = row_tile
    num_tiles = nxr // TR
    k8 = TR // 8
    nblk8 = nxr // 8

    kern = functools.partial(diffreact_kernel, tr=TR, nyl=nyl, num_tiles=num_tiles)

    in_specs = [
        pl.BlockSpec(memory_space=pltpu.MemorySpace.SMEM),               # coeffs + bc
        pl.BlockSpec((2, TR, nyl), lambda t: (0, t, 0)),                 # main row tile
    ]
    operands = [scal, uv]
    if num_tiles > 1:
        # 8-row halo blocks: last row of the block above / first row of the block below.
        in_specs += [
            pl.BlockSpec((2, 8, nyl),
                         lambda t: (0, jnp.maximum(t * k8 - 1, 0), 0)),
            pl.BlockSpec((2, 8, nyl),
                         lambda t: (0, jnp.minimum((t + 1) * k8, nblk8 - 1), 0)),
        ]
        operands += [uv, uv]

    block_bytes = 2 * TR * nyl * 4
    vmem_limit = int(min(64 * 1024 * 1024,
                         max(32 * 1024 * 1024, 14 * block_bytes + (2 << 20))))
    halo_bytes = (2 * 2 * 8 * nyl * 4) * num_tiles if num_tiles > 1 else 0

    out_full = pl.pallas_call(
        kern,
        grid=(num_tiles,),
        in_specs=in_specs,
        out_specs=pl.BlockSpec((2, TR, nyl), lambda t: (0, t, 0)),
        out_shape=jax.ShapeDtypeStruct((2, nxr, nyl), jnp.float32),
        compiler_params=pltpu.CompilerParams(
            dimension_semantics=("parallel",),          # shard row tiles across TCs (v7x)
            vmem_limit_bytes=vmem_limit),
        cost_estimate=pl.CostEstimate(
            flops=int(30 * nxr * nyl),
            transcendentals=0,
            bytes_accessed=int(16 * nxr * nyl + halo_bytes)),
    )(*operands)

    if nxr == Nx and nyl == Ny:
        out = out_full                                   # aligned: no extra HBM pass
    else:
        out = out_full[:, :Nx, :Ny]
    return out[None]                                     # [1, 2, Nx, Ny]


def diffreact_reference(state, bc, params_org, dx):
    """Pure-JAX mirror of the PyTorch forward."""
    U = state[:, :1]
    V = state[:, 1:]
    a = jax.nn.sigmoid(params_org["a_org"]) * 0.01
    b = jax.nn.sigmoid(params_org["b_org"]) * 0.01
    k = jax.nn.sigmoid(params_org["k_org"]) * 0.01
    Nx = U.shape[-2]

    def pad2d(X, bcc):
        left = jnp.full((1, 1, Nx, 1), bcc[0], X.dtype)
        right = jnp.full((1, 1, Nx, 1), bcc[1], X.dtype)
        Xp = jnp.concatenate([left, X, right], axis=3)
        Nyp = Xp.shape[-1]
        top = jnp.full((1, 1, 1, Nyp), bcc[2], X.dtype)
        bottom = jnp.full((1, 1, 1, Nyp), bcc[3], X.dtype)
        return jnp.concatenate([top, Xp, bottom], axis=2)

    def lap(Xp):
        c = Xp[:, :, 1:-1, 1:-1]
        up = Xp[:, :, :-2, 1:-1]
        dn = Xp[:, :, 2:, 1:-1]
        lf = Xp[:, :, 1:-1, :-2]
        rt = Xp[:, :, 1:-1, 2:]
        return (up + dn + lf + rt - 4.0 * c) / (dx * dx)

    Delta_u = lap(pad2d(U, bc[0, 0]))
    Delta_v = lap(pad2d(V, bc[0, 1]))
    dUdt = a * Delta_u + U - U ** 3 - V - k
    dVdt = b * Delta_v + U - V
    return jnp.concatenate([dUdt, dVdt], axis=1)


if __name__ == "__main__":
    key = jax.random.PRNGKey(0)
    params_org = {
        "a_org": jnp.float32(-2.0),
        "b_org": jnp.float32(-2.0),
        "k_org": jnp.float32(-2.0),
    }

    # Case 1: spec shape 16x16 (lane-padded path, single tile).
    k1, k2 = jax.random.split(key)
    state = jax.random.uniform(k1, (1, 2, 16, 16), dtype=jnp.float32)
    bc = jax.random.uniform(k2, (1, 2, 4), dtype=jnp.float32)
    dx = 1.0 / 16
    out = jax.block_until_ready(diffreact_forward(state, bc, params_org, dx))
    ref = diffreact_reference(state, bc, params_org, dx)
    assert out.shape == (1, 2, 16, 16)
    assert jnp.allclose(out, ref, rtol=1e-5, atol=1e-5), "mismatch (16x16)"

    # Case 2: aligned production-like shape — no pad/slice, 4 row tiles with halo exchange.
    k3, k4 = jax.random.split(k1)
    state2 = jax.random.uniform(k3, (1, 2, 64, 256), dtype=jnp.float32)
    bc2 = jax.random.uniform(k4, (1, 2, 4), dtype=jnp.float32)
    dx2 = 1.0 / 64
    out2 = jax.block_until_ready(
        diffreact_forward(state2, bc2, params_org, dx2, row_tile=16))
    ref2 = diffreact_reference(state2, bc2, params_org, dx2)
    assert jnp.allclose(out2, ref2, rtol=1e-5, atol=1e-5), "mismatch (64x256 tiled)"

    # Case 3: misaligned shape — bc-filled row/lane padding + multi-tile halos.
    k5, k6 = jax.random.split(k3)
    state3 = jax.random.uniform(k5, (1, 2, 20, 40), dtype=jnp.float32)
    bc3 = jax.random.uniform(k6, (1, 2, 4), dtype=jnp.float32)
    dx3 = 1.0 / 20
    out3 = jax.block_until_ready(
        diffreact_forward(state3, bc3, params_org, dx3, row_tile=8))
    ref3 = diffreact_reference(state3, bc3, params_org, dx3)
    assert jnp.allclose(out3, ref3, rtol=1e-5, atol=1e-5), "mismatch (20x40 padded)"

    print("KERNEL_OK")
</pallas_src>

<mosaic_0001>
module attributes {stable_mosaic.version = 11 : i64} {
  func.func @diffreact_kernel(%arg0: i32, %arg1: memref<11xf32, #tpu.memory_space<smem>>, %arg2: memref<2x16x128xf32, #tpu.memory_space<vmem>>, %arg3: memref<2x16x128xf32, #tpu.memory_space<vmem>>) attributes {dimension_semantics = [#tpu.dimension_semantics<parallel>], iteration_bounds = array<i64: 1>, scalar_prefetch = 0 : i64, scratch_operands = 0 : i64, tpu.core_type = #tpu.core_type<tc>, window_params = [{transform_indices = @transform_0, window_bounds = array<i64: 11>}, {transform_indices = @transform_1, window_bounds = array<i64: 2, 16, 128>}, {transform_indices = @transform_2, window_bounds = array<i64: 2, 16, 128>}]} {
    %c0 = arith.constant 0 : index
    %0 = memref.load %arg1[%c0] : memref<11xf32, #tpu.memory_space<smem>>
    %c1 = arith.constant 1 : index
    %1 = memref.load %arg1[%c1] : memref<11xf32, #tpu.memory_space<smem>>
    %c2 = arith.constant 2 : index
    %2 = memref.load %arg1[%c2] : memref<11xf32, #tpu.memory_space<smem>>
    %3 = tpu.iota {dimensions = array<i32: 0>} : vector<16x128xi32>
    %4 = tpu.iota {dimensions = array<i32: 1>} : vector<16x128xi32>
    %c0_i32 = arith.constant 0 : i32
    %5 = vector.broadcast %c0_i32 : i32 to vector<16x128xi32>
    %6 = arith.cmpi eq, %3, %5 : vector<16x128xi32>
    %c15_i32 = arith.constant 15 : i32
    %7 = vector.broadcast %c15_i32 : i32 to vector<16x128xi32>
    %8 = arith.cmpi eq, %3, %7 : vector<16x128xi32>
    %c0_i32_0 = arith.constant 0 : i32
    %9 = vector.broadcast %c0_i32_0 : i32 to vector<16x128xi32>
    %10 = arith.cmpi eq, %4, %9 : vector<16x128xi32>
    %c127_i32 = arith.constant 127 : i32
    %11 = vector.broadcast %c127_i32 : i32 to vector<16x128xi32>
    %12 = arith.cmpi eq, %4, %11 : vector<16x128xi32>
    %c3 = arith.constant 3 : index
    %13 = memref.load %arg1[%c3] : memref<11xf32, #tpu.memory_space<smem>>
    %c4 = arith.constant 4 : index
    %14 = memref.load %arg1[%c4] : memref<11xf32, #tpu.memory_space<smem>>
    %c5 = arith.constant 5 : index
    %15 = memref.load %arg1[%c5] : memref<11xf32, #tpu.memory_space<smem>>
    %c6 = arith.constant 6 : index
    %16 = memref.load %arg1[%c6] : memref<11xf32, #tpu.memory_space<smem>>
    %c0_1 = arith.constant 0 : index
    %c0_2 = arith.constant 0 : index
    %c0_3 = arith.constant 0 : index
    %17 = vector.load %arg2[%c0_1, %c0_2, %c0_3] : memref<2x16x128xf32, #tpu.memory_space<vmem>>, vector<1x16x128xf32>
    %18 = vector.shape_cast %17 : vector<1x16x128xf32> to vector<16x128xf32>
    %c1_i32 = arith.constant 1 : i32
    %19 = tpu.dynamic_rotate %18 by %c1_i32 dim 0 : vector<16x128xf32>, i32 -> vector<16x128xf32>
    %20 = vector.broadcast %15 : f32 to vector<16x128xf32>
    %21 = arith.select %6, %20, %19 : vector<16x128xi1>, vector<16x128xf32>
    %c15_i32_4 = arith.constant 15 : i32
    %22 = tpu.dynamic_rotate %18 by %c15_i32_4 dim 0 : vector<16x128xf32>, i32 -> vector<16x128xf32>
    %23 = vector.broadcast %16 : f32 to vector<16x128xf32>
    %24 = arith.select %8, %23, %22 : vector<16x128xi1>, vector<16x128xf32>
    %c1_i32_5 = arith.constant 1 : i32
    %25 = tpu.dynamic_rotate %18 by %c1_i32_5 dim 1 : vector<16x128xf32>, i32 -> vector<16x128xf32>
    %26 = vector.broadcast %13 : f32 to vector<16x128xf32>
    %27 = arith.select %10, %26, %25 : vector<16x128xi1>, vector<16x128xf32>
    %c127_i32_6 = arith.constant 127 : i32
    %28 = tpu.dynamic_rotate %18 by %c127_i32_6 dim 1 : vector<16x128xf32>, i32 -> vector<16x128xf32>
    %29 = vector.broadcast %14 : f32 to vector<16x128xf32>
    %30 = arith.select %12, %29, %28 : vector<16x128xi1>, vector<16x128xf32>
    %31 = arith.addf %21, %24 : vector<16x128xf32>
    %32 = arith.addf %31, %27 : vector<16x128xf32>
    %33 = arith.addf %32, %30 : vector<16x128xf32>
    %cst = arith.constant 4.000000e+00 : f32
    %34 = vector.broadcast %cst : f32 to vector<16x128xf32>
    %35 = arith.mulf %34, %18 : vector<16x128xf32>
    %36 = arith.subf %33, %35 : vector<16x128xf32>
    %c7 = arith.constant 7 : index
    %37 = memref.load %arg1[%c7] : memref<11xf32, #tpu.memory_space<smem>>
    %c8 = arith.constant 8 : index
    %38 = memref.load %arg1[%c8] : memref<11xf32, #tpu.memory_space<smem>>
    %c9 = arith.constant 9 : index
    %39 = memref.load %arg1[%c9] : memref<11xf32, #tpu.memory_space<smem>>
    %c10 = arith.constant 10 : index
    %40 = memref.load %arg1[%c10] : memref<11xf32, #tpu.memory_space<smem>>
    %c1_7 = arith.constant 1 : index
    %c0_8 = arith.constant 0 : index
    %c0_9 = arith.constant 0 : index
    %41 = vector.load %arg2[%c1_7, %c0_8, %c0_9] : memref<2x16x128xf32, #tpu.memory_space<vmem>>, vector<1x16x128xf32>
    %42 = vector.shape_cast %41 : vector<1x16x128xf32> to vector<16x128xf32>
    %c1_i32_10 = arith.constant 1 : i32
    %43 = tpu.dynamic_rotate %42 by %c1_i32_10 dim 0 : vector<16x128xf32>, i32 -> vector<16x128xf32>
    %44 = vector.broadcast %39 : f32 to vector<16x128xf32>
    %45 = arith.select %6, %44, %43 : vector<16x128xi1>, vector<16x128xf32>
    %c15_i32_11 = arith.constant 15 : i32
    %46 = tpu.dynamic_rotate %42 by %c15_i32_11 dim 0 : vector<16x128xf32>, i32 -> vector<16x128xf32>
    %47 = vector.broadcast %40 : f32 to vector<16x128xf32>
    %48 = arith.select %8, %47, %46 : vector<16x128xi1>, vector<16x128xf32>
    %c1_i32_12 = arith.constant 1 : i32
    %49 = tpu.dynamic_rotate %42 by %c1_i32_12 dim 1 : vector<16x128xf32>, i32 -> vector<16x128xf32>
    %50 = vector.broadcast %37 : f32 to vector<16x128xf32>
    %51 = arith.select %10, %50, %49 : vector<16x128xi1>, vector<16x128xf32>
    %c127_i32_13 = arith.constant 127 : i32
    %52 = tpu.dynamic_rotate %42 by %c127_i32_13 dim 1 : vector<16x128xf32>, i32 -> vector<16x128xf32>
    %53 = vector.broadcast %38 : f32 to vector<16x128xf32>
    %54 = arith.select %12, %53, %52 : vector<16x128xi1>, vector<16x128xf32>
    %55 = arith.addf %45, %48 : vector<16x128xf32>
    %56 = arith.addf %55, %51 : vector<16x128xf32>
    %57 = arith.addf %56, %54 : vector<16x128xf32>
    %cst_14 = arith.constant 4.000000e+00 : f32
    %58 = vector.broadcast %cst_14 : f32 to vector<16x128xf32>
    %59 = arith.mulf %58, %42 : vector<16x128xf32>
    %60 = arith.subf %57, %59 : vector<16x128xf32>
    %61 = vector.broadcast %0 : f32 to vector<16x128xf32>
    %62 = arith.mulf %61, %36 : vector<16x128xf32>
    %63 = arith.addf %62, %18 : vector<16x128xf32>
    %64 = arith.mulf %18, %18 : vector<16x128xf32>
    %65 = arith.mulf %64, %18 : vector<16x128xf32>
    %66 = arith.subf %63, %65 : vector<16x128xf32>
    %67 = arith.subf %66, %42 : vector<16x128xf32>
    %68 = vector.broadcast %2 : f32 to vector<16x128xf32>
    %69 = arith.subf %67, %68 : vector<16x128xf32>
    %c0_15 = arith.constant 0 : index
    %c0_16 = arith.constant 0 : index
    %c0_17 = arith.constant 0 : index
    %70 = vector.load %arg3[%c0_15, %c0_16, %c0_17] : memref<2x16x128xf32, #tpu.memory_space<vmem>>, vector<1x16x128xf32>
    %71 = vector.shape_cast %70 : vector<1x16x128xf32> to vector<16x128xf32>
    %72 = vector.shape_cast %69 : vector<16x128xf32> to vector<1x16x128xf32>
    tpu.vector_store %arg3[%c0_15, %c0_16, %c0_17], %72 {strides = array<i32>} : memref<2x16x128xf32, #tpu.memory_space<vmem>>, vector<1x16x128xf32>,
    %73 = vector.broadcast %1 : f32 to vector<16x128xf32>
    %74 = arith.mulf %73, %60 : vector<16x128xf32>
    %75 = arith.addf %74, %18 : vector<16x128xf32>
    %76 = arith.subf %75, %42 : vector<16x128xf32>
    %c1_18 = arith.constant 1 : index
    %c0_19 = arith.constant 0 : index
    %c0_20 = arith.constant 0 : index
    %77 = vector.load %arg3[%c1_18, %c0_19, %c0_20] : memref<2x16x128xf32, #tpu.memory_space<vmem>>, vector<1x16x128xf32>
    %78 = vector.shape_cast %77 : vector<1x16x128xf32> to vector<16x128xf32>
    %79 = vector.shape_cast %76 : vector<16x128xf32> to vector<1x16x128xf32>
    tpu.vector_store %arg3[%c1_18, %c0_19, %c0_20], %79 {strides = array<i32>} : memref<2x16x128xf32, #tpu.memory_space<vmem>>, vector<1x16x128xf32>,
    return
  }
  func.func @transform_0(%arg0: i32) -> i32 {
    %c0_i32 = arith.constant 0 : i32
    %c0_i32_0 = arith.constant 0 : i32
    return %c0_i32 : i32
  }
  func.func @transform_1(%arg0: i32) -> (i32, i32, i32) {
    %c0_i32 = arith.constant 0 : i32
    %c0_i32_0 = arith.constant 0 : i32
    %c0_i32_1 = arith.constant 0 : i32
    return %c0_i32, %arg0, %c0_i32_0 : i32, i32, i32
  }
  func.func @transform_2(%arg0: i32) -> (i32, i32, i32) {
    %c0_i32 = arith.constant 0 : i32
    %c0_i32_0 = arith.constant 0 : i32
    %c0_i32_1 = arith.constant 0 : i32
    return %c0_i32, %arg0, %c0_i32_0 : i32, i32, i32
  }
}

</mosaic_0001>

<llo_original>
// kernel: tpu_custom_call.1
$region0: #{tpu_custom_call.1}
  #allocation0 [shape = 'u32[]', space=smem, size = 0x4, offset = 0x4, fixed_abs, tag = 'smem constant byte address 0x4 - core index']
  #allocation1 [shape = 'u32[72,128]{1,0:T(1,128)}', space=vmem, size = 0x9000, scoped, tag = 'internal scratch']
  %s0 = inlined_call_operand.hbm [shape: f32[11], index: 0, kind: input, shape index: {}]
  %s1 = inlined_call_operand.hbm [shape: f32[2,16,128], index: 1, kind: input, shape index: {}]
  %s2 = inlined_call_operand.hbm [shape: f32[2,16,128], index: 2, kind: output, shape index: {}]
  %s3 = sld [smem:[#allocation0]]
  $region26: #{tpu_custom_call.1} parent=0
    _
  %s5 = ssub.s32 1, %s3
  %s6 = scalar_select 0, %s5, %s3
  $region1: #{tpu_custom_call.1} parent=0
    #allocation2 [shape = 'u8[512]{0}', space=smem, size = 0x200, scoped, tag = 'input window, operand 0, single buffered']
    #allocation3 [shape = 's32[1]{0}', space=sflag, size = 0x4, scoped, tag = 'scoped memory for tpu_custom_call.1']
    #allocation4 [shape = 's32[1]{0}', space=sflag, size = 0x4, scoped, tag = 'scoped memory for tpu_custom_call.1']
    #allocation5 [shape = 's32[1]{0}', space=sflag, size = 0x4, scoped, tag = 'scoped memory for tpu_custom_call.1']
    #allocation6 [shape = 'u8[16384]{0}', space=vmem, size = 0x4000, scoped, tag = 'input window, operand 1, single buffered']
    #allocation7 [shape = 'u8[16384]{0}', space=vmem, size = 0x4000, scoped, tag = 'output window, operand 0, single buffered']
    %7 = vsyncpa [#allocation5], 0
    %8 = vsyncpa [#allocation3], 0
    %9 = vsyncpa [#allocation4], 0
    // Predicated region
    $region2: #{tpu_custom_call.1} parent=1 // pred_check
      _
    $region3: #{tpu_custom_call.1} parent=1 // pred_check_branch
      %11 = sbr.rel (0) target = $region5
    $region4: #{tpu_custom_call.1} parent=1 // pred_region
      %13 = vsyncadd [#allocation5], 0
      %s15 = sshll.u32 %s0, 4
      %s16 = int_to_ptr.hbm [resolvable:$true] %s15
      %18 = dma.hbm_to_smem %s16, 16, [#allocation2], [#allocation5]
    $region5: #{tpu_custom_call.1} parent=1 // pred_fallthru
      _
    // Predicated region
    $region6: #{tpu_custom_call.1} parent=1 // pred_check
      _
    $region7: #{tpu_custom_call.1} parent=1 // pred_check_branch
      %20 = sbr.rel (0) target = $region9
    $region8: #{tpu_custom_call.1} parent=1 // pred_region
      %22 = vsyncadd [#allocation3], 0
      %s23 = sshll.u32 %s1, 4
      %s24 = int_to_ptr.hbm [resolvable:$true] %s23
      %s25 = sshll.u32 [#allocation6], 4
      %s26 = int_to_ptr.vmem [resolvable:$true] %s25
      %31 = dma.hbm_to_vmem [thread:$0]  %s24, 512, %s26, [#allocation3], 128, 128, 8
    $region9: #{tpu_custom_call.1} parent=1 // pred_fallthru
      _
    // Predicated region
    $region10: #{tpu_custom_call.1} parent=1 // pred_check
      _
    $region11: #{tpu_custom_call.1} parent=1 // pred_check_branch
      %33 = sbr.rel (0) target = $region13
    $region12: #{tpu_custom_call.1} parent=1 // pred_region
      %35 = dma.done [#allocation5], 16
    $region13: #{tpu_custom_call.1} parent=1 // pred_fallthru
      _
    // Predicated region
    $region14: #{tpu_custom_call.1} parent=1 // pred_check
      _
    $region15: #{tpu_custom_call.1} parent=1 // pred_check_branch
      %37 = sbr.rel (0) target = $region17
    $region16: #{tpu_custom_call.1} parent=1 // pred_region
      %39 = dma.done [#allocation3], 512
    $region17: #{tpu_custom_call.1} parent=1 // pred_fallthru
      _
    %40 = sfence
    %s41 = sld [smem:[#allocation2]]
    %s42 = sld [smem:[#allocation2 + $0x1]]
    %s43 = sld [smem:[#allocation2 + $0x2]]
    %v44 = vlaneseq
    %v45 = vshrl.u32 %v44, 7
    %v46 = vadd.s32 %v45, 8
    %v47 = vlaneseq
    %v48 = vand.u32 %v47, 127
    %vm49 = vcmp.eq.s32.totalorder %v45, 0
    %vm50 = vcmp.eq.s32.totalorder %v46, 0
    %vm51 = vcmp.eq.s32.totalorder %v45, 15
    %vm52 = vcmp.eq.s32.totalorder %v46, 15
    %vm53 = vcmp.eq.s32.totalorder %v48, 0
    %vm54 = vcmp.eq.s32.totalorder %v48, 127
    %s55 = sld [smem:[#allocation2 + $0x3]]
    %s56 = sld [smem:[#allocation2 + $0x4]]
    %s57 = sld [smem:[#allocation2 + $0x5]]
    %s58 = sld [smem:[#allocation2 + $0x6]]
    %v59 = vld [vmem:[#allocation6] sm:$0xff]
    %v60 = vld [vmem:[#allocation6 + $0x8] sm:$0xff]
    %v61 = vrot.slane %v59, 7
    %v62 = vrot.slane %v60, 7
    %vm63 = vcmp.lt.s32.totalorder %v45, 1
    %v64 = vsel %vm63, %v61, %v62
    %v65 = vsel %vm63, %v62, %v61
    %v66 = vstv %s57
    %v67 = vsel %vm49, %v66, %v65
    %v68 = vsel %vm50, %v66, %v64
    %v69 = vrot.slane %v59, 1
    %v70 = vrot.slane %v60, 1
    %vm71 = vcmp.lt.s32.totalorder %v45, 7
    %v72 = vsel %vm71, %v69, %v70
    %v73 = vsel %vm71, %v70, %v69
    %v74 = vstv %s58
    %v75 = vsel %vm51, %v74, %v72
    %v76 = vsel %vm52, %v74, %v73
    %77 = vrot.lane.b32.xlu0 %v59, 1
    %v78 = vpop.permute.xlu0 %77
    %79 = vrot.lane.b32.xlu0 %v60, 1
    %v80 = vpop.permute.xlu0 %79
    %v81 = vstv %s55
    %v82 = vsel %vm53, %v81, %v78
    %v83 = vsel %vm53, %v81, %v80
    %84 = vrot.lane.b32.xlu0 %v59, 127
    %v85 = vpop.permute.xlu0 %84
    %86 = vrot.lane.b32.xlu0 %v60, 127
    %v87 = vpop.permute.xlu0 %86
    %v88 = vstv %s56
    %v89 = vsel %vm54, %v88, %v85
    %v90 = vsel %vm54, %v88, %v87
    %v91 = vadd.f32 %v67, %v75
    %v92 = vadd.f32 %v68, %v76
    %v93 = vadd.f32 %v91, %v82
    %v94 = vadd.f32 %v92, %v83
    %v95 = vadd.f32 %v93, %v89
    %v96 = vadd.f32 %v94, %v90
    %v97 = vmul.f32 %v59, 4.0
    %v98 = vmul.f32 %v60, 4.0
    %v99 = vsub.f32 %v95, %v97
    %v100 = vsub.f32 %v96, %v98
    %s101 = sld [smem:[#allocation2 + $0x7]]
    %s102 = sld [smem:[#allocation2 + $0x8]]
    %s103 = sld [smem:[#allocation2 + $0x9]]
    %s104 = sld [smem:[#allocation2 + $0xa]]
    %s105 = scalar_lea.vmem [#allocation6], 16
    %v106 = vld [vmem:[%s105] sm:$0xff]
    %v107 = vld [vmem:[%s105 + $0x8] sm:$0xff]
    %v108 = vrot.slane %v106, 7
    %v109 = vrot.slane %v107, 7
    %v110 = vsel %vm63, %v108, %v109
    %v111 = vsel %vm63, %v109, %v108
    %v112 = vstv %s103
    %v113 = vsel %vm49, %v112, %v111
    %v114 = vsel %vm50, %v112, %v110
    %v115 = vrot.slane %v106, 1
    %v116 = vrot.slane %v107, 1
    %v117 = vsel %vm71, %v115, %v116
    %v118 = vsel %vm71, %v116, %v115
    %v119 = vstv %s104
    %v120 = vsel %vm51, %v119, %v117
    %v121 = vsel %vm52, %v119, %v118
    %122 = vrot.lane.b32.xlu0 %v106, 1
    %v123 = vpop.permute.xlu0 %122
    %124 = vrot.lane.b32.xlu0 %v107, 1
    %v125 = vpop.permute.xlu0 %124
    %v126 = vstv %s101
    %v127 = vsel %vm53, %v126, %v123
    %v128 = vsel %vm53, %v126, %v125
    %129 = vrot.lane.b32.xlu0 %v106, 127
    %v130 = vpop.permute.xlu0 %129
    %131 = vrot.lane.b32.xlu0 %v107, 127
    %v132 = vpop.permute.xlu0 %131
    %v133 = vstv %s102
    %v134 = vsel %vm54, %v133, %v130
    %v135 = vsel %vm54, %v133, %v132
    %v136 = vadd.f32 %v113, %v120
    %v137 = vadd.f32 %v114, %v121
    %v138 = vadd.f32 %v136, %v127
    %v139 = vadd.f32 %v137, %v128
    %v140 = vadd.f32 %v138, %v134
    %v141 = vadd.f32 %v139, %v135
    %v142 = vmul.f32 %v106, 4.0
    %v143 = vmul.f32 %v107, 4.0
    %v144 = vsub.f32 %v140, %v142
    %v145 = vsub.f32 %v141, %v143
    %v146 = vstv %s41
    %v147 = vmul.f32 %v146, %v99
    %v148 = vmul.f32 %v146, %v100
    %v149 = vadd.f32 %v147, %v59
    %v150 = vadd.f32 %v148, %v60
    %v151 = vmul.f32 %v59, %v59
    %v152 = vmul.f32 %v60, %v60
    %v153 = vmul.f32 %v151, %v59
    %v154 = vmul.f32 %v152, %v60
    %v155 = vsub.f32 %v149, %v153
    %v156 = vsub.f32 %v150, %v154
    %v157 = vsub.f32 %v155, %v106
    %v158 = vsub.f32 %v156, %v107
    %v159 = vstv %s43
    %v160 = vsub.f32 %v157, %v159
    %v161 = vsub.f32 %v158, %v159
    %162 = vst [vmem:[#allocation7] sm:$0xff] %v160
    %163 = vst [vmem:[#allocation7 + $0x8] sm:$0xff] %v161
    %v164 = vstv %s42
    %v165 = vmul.f32 %v164, %v144
    %v166 = vmul.f32 %v164, %v145
    %v167 = vadd.f32 %v165, %v59
    %v168 = vadd.f32 %v166, %v60
    %v169 = vsub.f32 %v167, %v106
    %v170 = vsub.f32 %v168, %v107
    %s171 = scalar_lea.vmem [#allocation7], 16
    %172 = vst [vmem:[%s171] sm:$0xff] %v169
    %173 = vst [vmem:[%s171 + $0x8] sm:$0xff] %v170
    // Predicated region
    $region18: #{tpu_custom_call.1} parent=1 // pred_check
      _
    $region19: #{tpu_custom_call.1} parent=1 // pred_check_branch
      %175 = sbr.rel (0) target = $region21
    $region20: #{tpu_custom_call.1} parent=1 // pred_region
      %177 = vsyncadd [#allocation4], 0
      %s178 = sshll.u32 [#allocation7], 4
      %s179 = int_to_ptr.vmem [resolvable:$true] %s178
      %s180 = sshll.u32 %s2, 4
      %s181 = int_to_ptr.hbm [resolvable:$true] %s180
      %186 = dma.vmem_to_hbm [thread:$0]  %s179, 512, %s181, [#allocation4], 128, 128, 8
    $region21: #{tpu_custom_call.1} parent=1 // pred_fallthru
      _
    // Predicated region
    $region22: #{tpu_custom_call.1} parent=1 // pred_check
      _
    $region23: #{tpu_custom_call.1} parent=1 // pred_check_branch
      %188 = sbr.rel (0) target = $region25
    $region24: #{tpu_custom_call.1} parent=1 // pred_region
      %190 = dma.done [#allocation4], 512
    $region25: #{tpu_custom_call.1} parent=1 // pred_fallthru
      _
    %191 = vsyncpa [#allocation3], 1
    %192 = vsyncpa [#allocation4], 1
    %193 = vsyncpa [#allocation5], 1

</llo_original>
